<compile_context>
chip_gen: v5e
topology: v5e:2x2
jax: 0.10.0
libtpu: 0.0.40
codegen_flags: <defaults>
</compile_context>

<pallas_src>
from typing import NamedTuple

import jax
import jax.numpy as jnp
from jax.experimental import pallas as pl
from jax.experimental.pallas import tpu as pltpu

ENCODER_DIM = 32
NUM_SUB = 3
BATCH = 2
SEQ = 8
H1 = ENCODER_DIM // 2        # 16
H2 = ENCODER_DIM // 4        # 8
HEAD_OUT = 2 + NUM_SUB * 2   # 8  (main logits then sub heads, concatenated)
LN_EPS = 1e-5
SLAB_COLS = H1               # 16 lanes (padded to 128 in VMEM; slab is tiny)

# ~4 MiB lane-dense input block per grid step (1 KiB/row at K = S*D = 256).
_TARGET_BLOCK_BYTES = 4 * 1024 * 1024
_VMEM_LIMIT_BYTES = 40 * 1024 * 1024


def _round_up(x, m):
    return ((x + m - 1) // m) * m


class _SlabLayout(NamedTuple):
    k_in: int    # S * D, rows of the folded w1
    r_w1: int
    r_ln1: int   # b1 / gamma1 / beta1 (3 rows)
    r_w2: int
    r_ln2: int   # b2 / gamma2 / beta2 (3 rows)
    r_wh: int    # fused (main + sub) head weight
    r_bh: int    # fused head bias
    rows: int


def _slab_layout(seq_len):
    k_in = seq_len * ENCODER_DIM
    r_w1 = 0
    r_ln1 = r_w1 + k_in
    r_w2 = _round_up(r_ln1 + 3, 8)
    r_ln2 = r_w2 + H1
    r_wh = _round_up(r_ln2 + 3, 8)
    r_bh = r_wh + H2
    rows = _round_up(r_bh + 1, 8)
    return _SlabLayout(k_in, r_w1, r_ln1, r_w2, r_ln2, r_wh, r_bh, rows)


def _layernorm(h, gamma, beta):
    mu = jnp.mean(h, axis=-1, keepdims=True)
    var = jnp.mean((h - mu) ** 2, axis=-1, keepdims=True)
    return (h - mu) * jax.lax.rsqrt(var + LN_EPS) * gamma + beta


def _make_kernel(L: _SlabLayout):
    def mtc_kernel(x_ref, p_ref, out_ref):
        # x is lane-dense (Bt, S*D); mean-pool's 1/S is folded into the slab's w1.
        x = x_ref[...].astype(jnp.float32)

        # ---- static views into the packed parameter slab (zero-cost) ----
        w1 = p_ref[L.r_w1:L.r_w1 + L.k_in, :]              # (S*D, H1)
        b1 = p_ref[L.r_ln1 + 0:L.r_ln1 + 1, :]             # (1, H1)
        g1 = p_ref[L.r_ln1 + 1:L.r_ln1 + 2, :]
        be1 = p_ref[L.r_ln1 + 2:L.r_ln1 + 3, :]

        w2 = p_ref[L.r_w2:L.r_w2 + H1, 0:H2]               # (H1, H2)
        b2 = p_ref[L.r_ln2 + 0:L.r_ln2 + 1, 0:H2]
        g2 = p_ref[L.r_ln2 + 1:L.r_ln2 + 2, 0:H2]
        be2 = p_ref[L.r_ln2 + 2:L.r_ln2 + 3, 0:H2]

        wh = p_ref[L.r_wh:L.r_wh + H2, 0:HEAD_OUT]         # (H2, HEAD_OUT)
        bh = p_ref[L.r_bh:L.r_bh + 1, 0:HEAD_OUT]          # (1, HEAD_OUT)

        # ---- mean-pool + shared layer 1 as one K=S*D MXU matmul ----
        h1 = jnp.dot(x, w1, preferred_element_type=jnp.float32) + b1
        h1 = jnp.maximum(_layernorm(h1, g1, be1), 0.0)     # Dropout: identity

        # ---- shared layer 2 ----
        h2 = jnp.dot(h1, w2, preferred_element_type=jnp.float32) + b2
        h2 = jnp.maximum(_layernorm(h2, g2, be2), 0.0)     # Dropout: identity

        # ---- fused heads: single matmul, single (Bt, 8) output slab ----
        out_ref[...] = jnp.dot(h2, wh, preferred_element_type=jnp.float32) + bh

    return mtc_kernel


def pack_params(params, seq_len, L: _SlabLayout):
    """Pack all parameters into one (L.rows, SLAB_COLS) f32 slab.

    The mean-pool 1/S is folded into w1 (which is stacked S times so it contracts
    directly against the (B, S*D) reshaped input); the heads are fused column-wise.
    """
    (w1, b1, g1, be1, w2, b2, g2, be2, wm, bm, ws, bs) = params
    slab = jnp.zeros((L.rows, SLAB_COLS), jnp.float32)

    w1_big = jnp.tile(w1, (seq_len, 1)) / float(seq_len)   # (S*D, H1)
    slab = slab.at[L.r_w1:L.r_w1 + L.k_in, :H1].set(w1_big)
    slab = slab.at[L.r_ln1 + 0, :H1].set(b1.reshape(H1))
    slab = slab.at[L.r_ln1 + 1, :H1].set(g1.reshape(H1))
    slab = slab.at[L.r_ln1 + 2, :H1].set(be1.reshape(H1))

    slab = slab.at[L.r_w2:L.r_w2 + H1, :H2].set(w2)
    slab = slab.at[L.r_ln2 + 0, :H2].set(b2.reshape(H2))
    slab = slab.at[L.r_ln2 + 1, :H2].set(g2.reshape(H2))
    slab = slab.at[L.r_ln2 + 2, :H2].set(be2.reshape(H2))

    wh = jnp.concatenate([wm, ws], axis=1)                 # (H2, HEAD_OUT)
    bh = jnp.concatenate([bm, bs], axis=1)                 # (1, HEAD_OUT)
    slab = slab.at[L.r_wh:L.r_wh + H2, :HEAD_OUT].set(wh)
    slab = slab.at[L.r_bh, :HEAD_OUT].set(bh.reshape(HEAD_OUT))
    return slab


def _pick_batch_tile(B, K):
    """Pick the batch tile: ~4 MiB lane-dense block, >= 8 grid steps at large B."""
    max_bt = max(8, _TARGET_BLOCK_BYTES // (K * 4))         # 4096 for K=256
    if B <= max_bt:
        return B                                            # full-dim block (always legal)
    bt = pl.cdiv(B, 8)                                      # >= 8 steps (>= 4 per TC on v7x)
    bt = _round_up(bt, 8)                                    # sublane-aligned
    return min(max_bt, bt)


def multi_task_classifier(x, params):
    """x: (B, S, D) float32. Returns (main_out (B, 2), sub_outs (B, NUM_SUB, 2))."""
    B, S, D = x.shape
    assert D == ENCODER_DIM
    K = S * D

    L = _slab_layout(S)
    slab = pack_params(params, S, L)
    x2d = x.reshape(B, K)                                    # free, contiguous, lane-dense

    Bt = _pick_batch_tile(B, K)
    grid = (pl.cdiv(B, Bt),)

    flops = 2 * B * (K * H1 + H1 * H2 + H2 * HEAD_OUT)
    bytes_accessed = (x2d.size + slab.size + B * HEAD_OUT) * 4

    out = pl.pallas_call(
        _make_kernel(L),
        out_shape=jax.ShapeDtypeStruct((B, HEAD_OUT), jnp.float32),
        grid=grid,
        in_specs=[
            pl.BlockSpec((Bt, K), lambda i: (i, 0)),
            # constant index_map -> parameter slab DMA'd once, stays VMEM-resident
            pl.BlockSpec((L.rows, SLAB_COLS), lambda i: (0, 0)),
        ],
        out_specs=pl.BlockSpec((Bt, HEAD_OUT), lambda i: (i, 0)),
        compiler_params=pltpu.CompilerParams(
            dimension_semantics=("parallel",),
            vmem_limit_bytes=_VMEM_LIMIT_BYTES,
        ),
        cost_estimate=pl.CostEstimate(
            flops=flops, transcendentals=2 * B, bytes_accessed=bytes_accessed),
    )(x2d, slab)

    main_out = out[:, :2]
    sub_outs = out[:, 2:].reshape(B, NUM_SUB, 2)
    return main_out, sub_outs


def init_params(key):
    """Deterministic synthetic parameters (shapes match the PyTorch module)."""
    ks = jax.random.split(key, 8)

    def lin(k, fan_in, fan_out):
        kw, kb = jax.random.split(k)
        scale = 1.0 / jnp.sqrt(fan_in)
        w = jax.random.uniform(kw, (fan_in, fan_out), jnp.float32, -scale, scale)
        b = jax.random.uniform(kb, (1, fan_out), jnp.float32, -scale, scale)
        return w, b

    w1, b1 = lin(ks[0], ENCODER_DIM, H1)
    g1 = jnp.ones((1, H1), jnp.float32)
    be1 = jnp.zeros((1, H1), jnp.float32)

    w2, b2 = lin(ks[1], H1, H2)
    g2 = jnp.ones((1, H2), jnp.float32)
    be2 = jnp.zeros((1, H2), jnp.float32)

    wm, bm = lin(ks[2], H2, 2)

    sub_ws, sub_bs = [], []
    for i in range(NUM_SUB):
        w, b = lin(ks[3 + i], H2, 2)
        sub_ws.append(w)
        sub_bs.append(b)
    ws = jnp.concatenate(sub_ws, axis=1)          # (H2, NUM_SUB*2)
    bs = jnp.concatenate(sub_bs, axis=1)          # (1, NUM_SUB*2)

    return (w1, b1, g1, be1, w2, b2, g2, be2, wm, bm, ws, bs)


def reference(x, params):
    (w1, b1, g1, be1, w2, b2, g2, be2, wm, bm, ws, bs) = params
    xm = jnp.mean(x, axis=1)
    h1 = xm @ w1 + b1
    h1 = jnp.maximum(_layernorm(h1, g1, be1), 0.0)
    h2 = h1 @ w2 + b2
    h2 = jnp.maximum(_layernorm(h2, g2, be2), 0.0)
    main = h2 @ wm + bm
    sub = (h2 @ ws + bs).reshape(x.shape[0], NUM_SUB, 2)
    return main, sub


if __name__ == "__main__":
    key = jax.random.PRNGKey(0)
    kx, kp = jax.random.split(key)
    x = jax.random.normal(kx, (BATCH, SEQ, ENCODER_DIM), jnp.float32)
    params = init_params(kp)

    main_out, sub_outs = multi_task_classifier(x, params)
    jax.block_until_ready((main_out, sub_outs))

    ref_main, ref_sub = reference(x, params)
    assert main_out.shape == (BATCH, 2)
    assert sub_outs.shape == (BATCH, NUM_SUB, 2)
    assert jnp.allclose(main_out, ref_main, atol=1e-5, rtol=1e-5)
    assert jnp.allclose(sub_outs, ref_sub, atol=1e-5, rtol=1e-5)

    print("KERNEL_OK")
</pallas_src>

<mosaic_0001>
module attributes {stable_mosaic.version = 11 : i64} {
  func.func @mtc_kernel(%arg0: i32, %arg1: memref<2x256xf32, #tpu.memory_space<vmem>>, %arg2: memref<304x16xf32, #tpu.memory_space<vmem>>, %arg3: memref<2x8xf32, #tpu.memory_space<vmem>>) attributes {dimension_semantics = [#tpu.dimension_semantics<parallel>], iteration_bounds = array<i64: 1>, scalar_prefetch = 0 : i64, scratch_operands = 0 : i64, tpu.core_type = #tpu.core_type<tc>, window_params = [{transform_indices = @transform_0, window_bounds = array<i64: 2, 256>}, {pipeline_mode = #tpu.pipeline_mode<synchronous>, transform_indices = @transform_1, window_bounds = array<i64: 304, 16>}, {transform_indices = @transform_2, window_bounds = array<i64: 2, 8>}]} {
    %c0 = arith.constant 0 : index
    %c0_0 = arith.constant 0 : index
    %0 = vector.load %arg1[%c0, %c0_0] : memref<2x256xf32, #tpu.memory_space<vmem>>, vector<2x256xf32>
    %c0_1 = arith.constant 0 : index
    %c0_2 = arith.constant 0 : index
    %1 = vector.load %arg2[%c0_1, %c0_2] : memref<304x16xf32, #tpu.memory_space<vmem>>, vector<256x16xf32>
    %c256 = arith.constant 256 : index
    %c0_3 = arith.constant 0 : index
    %2 = vector.load %arg2[%c256, %c0_3] : memref<304x16xf32, #tpu.memory_space<vmem>>, vector<1x16xf32>
    %c257 = arith.constant 257 : index
    %c0_4 = arith.constant 0 : index
    %3 = vector.load %arg2[%c257, %c0_4] : memref<304x16xf32, #tpu.memory_space<vmem>>, vector<1x16xf32>
    %c258 = arith.constant 258 : index
    %c0_5 = arith.constant 0 : index
    %4 = vector.load %arg2[%c258, %c0_5] : memref<304x16xf32, #tpu.memory_space<vmem>>, vector<1x16xf32>
    %c264 = arith.constant 264 : index
    %c0_6 = arith.constant 0 : index
    %5 = vector.load %arg2[%c264, %c0_6] : memref<304x16xf32, #tpu.memory_space<vmem>>, vector<16x8xf32>
    %c280 = arith.constant 280 : index
    %c0_7 = arith.constant 0 : index
    %6 = vector.load %arg2[%c280, %c0_7] : memref<304x16xf32, #tpu.memory_space<vmem>>, vector<1x8xf32>
    %c281 = arith.constant 281 : index
    %c0_8 = arith.constant 0 : index
    %7 = vector.load %arg2[%c281, %c0_8] : memref<304x16xf32, #tpu.memory_space<vmem>>, vector<1x8xf32>
    %c282 = arith.constant 282 : index
    %c0_9 = arith.constant 0 : index
    %8 = vector.load %arg2[%c282, %c0_9] : memref<304x16xf32, #tpu.memory_space<vmem>>, vector<1x8xf32>
    %c288 = arith.constant 288 : index
    %c0_10 = arith.constant 0 : index
    %9 = vector.load %arg2[%c288, %c0_10] : memref<304x16xf32, #tpu.memory_space<vmem>>, vector<8x8xf32>
    %c296 = arith.constant 296 : index
    %c0_11 = arith.constant 0 : index
    %10 = vector.load %arg2[%c296, %c0_11] : memref<304x16xf32, #tpu.memory_space<vmem>>, vector<1x8xf32>
    %cst = arith.constant dense<0.000000e+00> : vector<2x16xf32>
    %11 = tpu.matmul %0, %1, %cst {dimension_numbers = #tpu.dot_dimension_numbers<[1], [0], [0], [1], [0, 0, 1, 1], [], []>} : vector<2x256xf32>, vector<256x16xf32>, vector<2x16xf32> -> vector<2x16xf32>
    %12 = vector.broadcast %2 : vector<1x16xf32> to vector<2x16xf32>
    %13 = arith.addf %11, %12 : vector<2x16xf32>
    %cst_12 = arith.constant dense<0.000000e+00> : vector<2xf32>
    %14 = vector.multi_reduction <add>, %13, %cst_12 [1] : vector<2x16xf32> to vector<2xf32>
    %15 = vector.shape_cast %14 : vector<2xf32> to vector<2x1xf32>
    %cst_13 = arith.constant 1.600000e+01 : f32
    %16 = vector.broadcast %cst_13 : f32 to vector<2x1xf32>
    %17 = arith.divf %15, %16 : vector<2x1xf32>
    %18 = vector.broadcast %17 : vector<2x1xf32> to vector<2x16xf32>
    %19 = arith.subf %13, %18 : vector<2x16xf32>
    %20 = arith.mulf %19, %19 : vector<2x16xf32>
    %cst_14 = arith.constant dense<0.000000e+00> : vector<2xf32>
    %21 = vector.multi_reduction <add>, %20, %cst_14 [1] : vector<2x16xf32> to vector<2xf32>
    %22 = vector.shape_cast %21 : vector<2xf32> to vector<2x1xf32>
    %cst_15 = arith.constant 1.600000e+01 : f32
    %23 = vector.broadcast %cst_15 : f32 to vector<2x1xf32>
    %24 = arith.divf %22, %23 : vector<2x1xf32>
    %25 = vector.broadcast %17 : vector<2x1xf32> to vector<2x16xf32>
    %26 = arith.subf %13, %25 : vector<2x16xf32>
    %cst_16 = arith.constant 9.99999974E-6 : f32
    %27 = vector.broadcast %cst_16 : f32 to vector<2x1xf32>
    %28 = arith.addf %24, %27 : vector<2x1xf32>
    %29 = math.rsqrt %28 : vector<2x1xf32>
    %30 = vector.broadcast %29 : vector<2x1xf32> to vector<2x16xf32>
    %31 = arith.mulf %26, %30 : vector<2x16xf32>
    %32 = vector.broadcast %3 : vector<1x16xf32> to vector<2x16xf32>
    %33 = arith.mulf %31, %32 : vector<2x16xf32>
    %34 = vector.broadcast %4 : vector<1x16xf32> to vector<2x16xf32>
    %35 = arith.addf %33, %34 : vector<2x16xf32>
    %cst_17 = arith.constant 0.000000e+00 : f32
    %36 = vector.broadcast %cst_17 : f32 to vector<2x16xf32>
    %37 = arith.maximumf %35, %36 : vector<2x16xf32>
    %cst_18 = arith.constant dense<0.000000e+00> : vector<2x8xf32>
    %38 = tpu.matmul %37, %5, %cst_18 {dimension_numbers = #tpu.dot_dimension_numbers<[1], [0], [0], [1], [0, 0, 1, 1], [], []>} : vector<2x16xf32>, vector<16x8xf32>, vector<2x8xf32> -> vector<2x8xf32>
    %39 = vector.broadcast %6 : vector<1x8xf32> to vector<2x8xf32>
    %40 = arith.addf %38, %39 : vector<2x8xf32>
    %cst_19 = arith.constant dense<0.000000e+00> : vector<2xf32>
    %41 = vector.multi_reduction <add>, %40, %cst_19 [1] : vector<2x8xf32> to vector<2xf32>
    %42 = vector.shape_cast %41 : vector<2xf32> to vector<2x1xf32>
    %cst_20 = arith.constant 8.000000e+00 : f32
    %43 = vector.broadcast %cst_20 : f32 to vector<2x1xf32>
    %44 = arith.divf %42, %43 : vector<2x1xf32>
    %45 = vector.broadcast %44 : vector<2x1xf32> to vector<2x8xf32>
    %46 = arith.subf %40, %45 : vector<2x8xf32>
    %47 = arith.mulf %46, %46 : vector<2x8xf32>
    %cst_21 = arith.constant dense<0.000000e+00> : vector<2xf32>
    %48 = vector.multi_reduction <add>, %47, %cst_21 [1] : vector<2x8xf32> to vector<2xf32>
    %49 = vector.shape_cast %48 : vector<2xf32> to vector<2x1xf32>
    %cst_22 = arith.constant 8.000000e+00 : f32
    %50 = vector.broadcast %cst_22 : f32 to vector<2x1xf32>
    %51 = arith.divf %49, %50 : vector<2x1xf32>
    %52 = vector.broadcast %44 : vector<2x1xf32> to vector<2x8xf32>
    %53 = arith.subf %40, %52 : vector<2x8xf32>
    %cst_23 = arith.constant 9.99999974E-6 : f32
    %54 = vector.broadcast %cst_23 : f32 to vector<2x1xf32>
    %55 = arith.addf %51, %54 : vector<2x1xf32>
    %56 = math.rsqrt %55 : vector<2x1xf32>
    %57 = vector.broadcast %56 : vector<2x1xf32> to vector<2x8xf32>
    %58 = arith.mulf %53, %57 : vector<2x8xf32>
    %59 = vector.broadcast %7 : vector<1x8xf32> to vector<2x8xf32>
    %60 = arith.mulf %58, %59 : vector<2x8xf32>
    %61 = vector.broadcast %8 : vector<1x8xf32> to vector<2x8xf32>
    %62 = arith.addf %60, %61 : vector<2x8xf32>
    %cst_24 = arith.constant 0.000000e+00 : f32
    %63 = vector.broadcast %cst_24 : f32 to vector<2x8xf32>
    %64 = arith.maximumf %62, %63 : vector<2x8xf32>
    %cst_25 = arith.constant dense<0.000000e+00> : vector<2x8xf32>
    %65 = tpu.matmul %64, %9, %cst_25 {dimension_numbers = #tpu.dot_dimension_numbers<[1], [0], [0], [1], [0, 0, 1, 1], [], []>} : vector<2x8xf32>, vector<8x8xf32>, vector<2x8xf32> -> vector<2x8xf32>
    %66 = vector.broadcast %10 : vector<1x8xf32> to vector<2x8xf32>
    %67 = arith.addf %65, %66 : vector<2x8xf32>
    %c0_26 = arith.constant 0 : index
    %c0_27 = arith.constant 0 : index
    %68 = vector.load %arg3[%c0_26, %c0_27] : memref<2x8xf32, #tpu.memory_space<vmem>>, vector<2x8xf32>
    tpu.vector_store %arg3[%c0_26, %c0_27], %67 {strides = array<i32>} : memref<2x8xf32, #tpu.memory_space<vmem>>, vector<2x8xf32>,
    return
  }
  func.func @transform_0(%arg0: i32) -> (i32, i32) {
    %c0_i32 = arith.constant 0 : i32
    %c0_i32_0 = arith.constant 0 : i32
    return %arg0, %c0_i32 : i32, i32
  }
  func.func @transform_1(%arg0: i32) -> (i32, i32) {
    %c0_i32 = arith.constant 0 : i32
    %c0_i32_0 = arith.constant 0 : i32
    %c0_i32_1 = arith.constant 0 : i32
    return %c0_i32, %c0_i32_0 : i32, i32
  }
  func.func @transform_2(%arg0: i32) -> (i32, i32) {
    %c0_i32 = arith.constant 0 : i32
    %c0_i32_0 = arith.constant 0 : i32
    return %arg0, %c0_i32 : i32, i32
  }
}

</mosaic_0001>

<llo_original>
// kernel: tpu_custom_call.1
$region0: #{tpu_custom_call.1}
  #allocation0 [shape = 'u32[]', space=smem, size = 0x4, offset = 0x4, fixed_abs, tag = 'smem constant byte address 0x4 - core index']
  #allocation1 [shape = 'u32[72,128]{1,0:T(1,128)}', space=vmem, size = 0x9000, scoped, tag = 'internal scratch']
  %s0 = inlined_call_operand.vmem [shape: f32[2,256], index: 0, kind: input, shape index: {}]
  %s1 = inlined_call_operand.vmem [shape: f32[304,16], index: 1, kind: input, shape index: {}]
  %s2 = inlined_call_operand.hbm [shape: f32[2,8], index: 2, kind: output, shape index: {}]
  %s3 = sld [smem:[#allocation0]]
  $region18: #{tpu_custom_call.1} parent=0
    _
  %s5 = ssub.s32 1, %s3
  %s6 = scalar_select 0, %s5, %s3
  $region1: #{tpu_custom_call.1} parent=0
    #allocation2 [shape = 'u8[1024]{0}', space=vmem, size = 0x400, scoped, tag = 'output window, operand 0, single buffered']
    #allocation3 [shape = 's32[1]{0}', space=sflag, size = 0x4, scoped, tag = 'scoped memory for tpu_custom_call.1']
    %7 = vsyncpa [#allocation3], 0
    // Predicated region
    $region2: #{tpu_custom_call.1} parent=1 // pred_check
      _
    $region3: #{tpu_custom_call.1} parent=1 // pred_check_branch
      %9 = sbr.rel (0) target = $region5
    $region4: #{tpu_custom_call.1} parent=1 // pred_region
      _
    $region5: #{tpu_custom_call.1} parent=1 // pred_fallthru
      _
    // Predicated region
    $region6: #{tpu_custom_call.1} parent=1 // pred_check
      _
    $region7: #{tpu_custom_call.1} parent=1 // pred_check_branch
      %11 = sbr.rel (0) target = $region9
    $region8: #{tpu_custom_call.1} parent=1 // pred_region
      _
    $region9: #{tpu_custom_call.1} parent=1 // pred_fallthru
      _
    %v12 = vld [vmem:[%s0] sm:$0xf]
    %v13 = vld [vmem:[%s1] sm:$0xff]
    %v14 = vld [vmem:[%s1 + $0x8] sm:$0xff]
    %v15 = vld [vmem:[%s1 + $0x10] sm:$0xff]
    %v16 = vld [vmem:[%s1 + $0x18] sm:$0xff]
    %v17 = vld [vmem:[%s1 + $0x20] sm:$0xff]
    %v18 = vld [vmem:[%s1 + $0x28] sm:$0xff]
    %v19 = vld [vmem:[%s1 + $0x30] sm:$0xff]
    %v20 = vld [vmem:[%s1 + $0x38] sm:$0xff]
    %v21 = vld [vmem:[%s1 + $0x40] sm:$0xff]
    %v22 = vld [vmem:[%s1 + $0x48] sm:$0xff]
    %v23 = vld [vmem:[%s1 + $0x50] sm:$0xff]
    %v24 = vld [vmem:[%s1 + $0x58] sm:$0xff]
    %v25 = vld [vmem:[%s1 + $0x60] sm:$0xff]
    %v26 = vld [vmem:[%s1 + $0x68] sm:$0xff]
    %v27 = vld [vmem:[%s1 + $0x70] sm:$0xff]
    %v28 = vld [vmem:[%s1 + $0x78] sm:$0xff]
    %v29 = vld [vmem:[%s1 + $0x80] sm:$0xff]
    %v30 = vld [vmem:[%s1 + $0x88] sm:$0xff]
    %v31 = vld [vmem:[%s1 + $0x90] sm:$0xff]
    %v32 = vld [vmem:[%s1 + $0x98] sm:$0xff]
    %v33 = vld [vmem:[%s1 + $0xa0] sm:$0xff]
    %v34 = vld [vmem:[%s1 + $0xa8] sm:$0xff]
    %v35 = vld [vmem:[%s1 + $0xb0] sm:$0xff]
    %v36 = vld [vmem:[%s1 + $0xb8] sm:$0xff]
    %v37 = vld [vmem:[%s1 + $0xc0] sm:$0xff]
    %v38 = vld [vmem:[%s1 + $0xc8] sm:$0xff]
    %v39 = vld [vmem:[%s1 + $0xd0] sm:$0xff]
    %v40 = vld [vmem:[%s1 + $0xd8] sm:$0xff]
    %v41 = vld [vmem:[%s1 + $0xe0] sm:$0xff]
    %v42 = vld [vmem:[%s1 + $0xe8] sm:$0xff]
    %v43 = vld [vmem:[%s1 + $0xf0] sm:$0xff]
    %v44 = vld [vmem:[%s1 + $0xf8] sm:$0xff]
    %v45 = vld [vmem:[%s1 + $0x100] sm:$0x1]
    %v46 = vld [vmem:[%s1 + $0x101] sm:$0x1]
    %v47 = vld [vmem:[%s1 + $0x102] sm:$0x1]
    %v48 = vld [vmem:[%s1 + $0x108] sm:$0xff]
    %v49 = vld [vmem:[%s1 + $0x110] sm:$0xff]
    %v50 = vld [vmem:[%s1 + $0x118] sm:$0x1]
    %v51 = vld [vmem:[%s1 + $0x119] sm:$0x1]
    %v52 = vld [vmem:[%s1 + $0x11a] sm:$0x1]
    %v53 = vld [vmem:[%s1 + $0x120] sm:$0xff]
    %v54 = vld [vmem:[%s1 + $0x128] sm:$0x1]
    %v55 = vperm.slane %v45, 0
    %57 = vst [vmem:[#allocation1] ss:$4 sm:$0xff] %v12
    %v58 = vld.sshfl [vmem:[#allocation1] sm:$0xff pattern:$0x73625140]
    %v59 = vld.sshfl [vmem:[#allocation1 + $0x8] sm:$0xff pattern:$0x73625140]
    %62 = vmatpush.msra.mxu0 %v28
    %63 = vmatpush.msra.mxu0 %v27
    %64 = vmatpush.msra.mxu0 %v26
    %65 = vmatpush.msra.mxu0 %v25
    %66 = vmatpush.msra.mxu0 %v24
    %67 = vmatpush.msra.mxu0 %v23
    %68 = vmatpush.msra.mxu0 %v22
    %69 = vmatpush.msra.mxu0 %v21
    %70 = vmatpush.msra.mxu0 %v20
    %71 = vmatpush.msra.mxu0 %v19
    %72 = vmatpush.msra.mxu0 %v18
    %73 = vmatpush.msra.mxu0 %v17
    %74 = vmatpush.msra.mxu0 %v16
    %75 = vmatpush.msra.mxu0 %v15
    %76 = vmatpush.msra.mxu0 %v14
    %77 = vmatpush.msra.mxu0 %v13
    %78 = vmatmul.f32.gmra.mxu0 %v58
    %v79 = vpop.f32.mrf.mxu0
    %v80 = vadd.f32 %v55, %v79
    %81 = vdwg.mxu0
    %82 = vmatpush.msra.mxu0 %v44
    %83 = vmatpush.msra.mxu0 %v43
    %84 = vmatpush.msra.mxu0 %v42
    %85 = vmatpush.msra.mxu0 %v41
    %86 = vmatpush.msra.mxu0 %v40
    %87 = vmatpush.msra.mxu0 %v39
    %88 = vmatpush.msra.mxu0 %v38
    %89 = vmatpush.msra.mxu0 %v37
    %90 = vmatpush.msra.mxu0 %v36
    %91 = vmatpush.msra.mxu0 %v35
    %92 = vmatpush.msra.mxu0 %v34
    %93 = vmatpush.msra.mxu0 %v33
    %94 = vmatpush.msra.mxu0 %v32
    %95 = vmatpush.msra.mxu0 %v31
    %96 = vmatpush.msra.mxu0 %v30
    %97 = vmatpush.msra.mxu0 %v29
    %98 = vmatmul.f32.gmra.mxu0 %v59
    %v99 = vpop.f32.mrf.mxu0
    %v100 = vadd.f32 %v80, %v99
    %101 = vdwg.mxu0
    %vm102 = vcmask 123904
    %v103 = vsel %vm102, %v100, 0.0
    %104 = vadd.xlane.f32.xlu0 %v103
    %v105 = vpop.xlane.xlu0 %104
    %v106 = vrcp.pop 16.0
    %v107 = vmul.f32 16.0, %v106
    %v108 = vsub.f32 1.0, %v107
    %v109 = vmul.f32 %v106, %v108
    %v110 = vadd.f32 %v106, %v109
    %vm111 = vweird.f32 %v106
    %v112 = vsel %vm111, %v106, %v110
    %v113 = vmul.f32 %v105, %v112
    %v114 = vsub.f32 %v100, %v113
    %v115 = vmul.f32 %v114, %v114
    %v116 = vsel %vm102, %v115, 0.0
    %117 = vadd.xlane.f32.xlu0 %v116
    %v118 = vpop.xlane.xlu0 %117
    %v119 = vmul.f32 %v118, %v112
    %v120 = vadd.f32 %v119, 1e-05
    %v121 = vrsqrt.pop %v120
    %v122 = vmul.f32 %v121, %v120
    %v123 = vmul.f32 %v122, %v121
    %v124 = vmul.f32 0.5, %v123
    %v125 = vsub.f32 1.5, %v124
    %v126 = vmul.f32 %v121, %v125
    %vm127 = vweird.f32 %v120
    %vm128 = vweird.f32 %v121
    %vm129 = vmor %vm127, %vm128
    %v130 = vsel %vm129, %v121, %v126
    %v131 = vmul.f32 %v114, %v130
    %v132 = vperm.slane %v46, 0
    %v133 = vmul.f32 %v131, %v132
    %v134 = vperm.slane %v47, 0
    %v135 = vadd.f32 %v133, %v134
    %v136 = vmax.f32 %v135, 0.0
    %v137 = vperm.slane %v50, 0
    %vm138 = vcmask 130048
    %v140 = vsel %vm138, %v136, 0
    %142 = vmatpush.msra.mxu0 0.0
    %143 = vmatpush.msra.mxu0 0.0
    %144 = vmatpush.msra.mxu0 0.0
    %145 = vmatpush.msra.mxu0 0.0
    %146 = vmatpush.msra.mxu0 0.0
    %147 = vmatpush.msra.mxu0 0.0
    %148 = vmatpush.msra.mxu0 0.0
    %149 = vmatpush.msra.mxu0 0.0
    %150 = vmatpush.msra.mxu0 0.0
    %151 = vmatpush.msra.mxu0 0.0
    %152 = vmatpush.msra.mxu0 0.0
    %153 = vmatpush.msra.mxu0 0.0
    %154 = vmatpush.msra.mxu0 0.0
    %155 = vmatpush.msra.mxu0 0.0
    %156 = vmatpush.msra.mxu0 %v49
    %157 = vmatpush.msra.mxu0 %v48
    %158 = vmatmul.f32.gmra.mxu0 %v140
    %v159 = vpop.f32.mrf.mxu0
    %v160 = vadd.f32 %v137, %v159
    %161 = vdwg.mxu0
    %vm162 = vcmask 58368
    %v163 = vsel %vm162, %v160, 0.0
    %164 = vadd.xlane.f32.xlu0 %v163
    %v165 = vpop.xlane.xlu0 %164
    %v166 = vrcp.pop 8.0
    %v167 = vmul.f32 8.0, %v166
    %v168 = vsub.f32 1.0, %v167
    %v169 = vmul.f32 %v166, %v168
    %v170 = vadd.f32 %v166, %v169
    %vm171 = vweird.f32 %v166
    %v172 = vsel %vm171, %v166, %v170
    %v173 = vmul.f32 %v165, %v172
    %v174 = vsub.f32 %v160, %v173
    %v175 = vmul.f32 %v174, %v174
    %v176 = vsel %vm162, %v175, 0.0
    %177 = vadd.xlane.f32.xlu0 %v176
    %v178 = vpop.xlane.xlu0 %177
    %v179 = vmul.f32 %v178, %v172
    %v180 = vadd.f32 %v179, 1e-05
    %v181 = vrsqrt.pop %v180
    %v182 = vmul.f32 %v181, %v180
    %v183 = vmul.f32 %v182, %v181
    %v184 = vmul.f32 0.5, %v183
    %v185 = vsub.f32 1.5, %v184
    %v186 = vmul.f32 %v181, %v185
    %vm187 = vweird.f32 %v180
    %vm188 = vweird.f32 %v181
    %vm189 = vmor %vm187, %vm188
    %v190 = vsel %vm189, %v181, %v186
    %v191 = vmul.f32 %v174, %v190
    %v192 = vperm.slane %v51, 0
    %v193 = vmul.f32 %v191, %v192
    %v194 = vperm.slane %v52, 0
    %v195 = vadd.f32 %v193, %v194
    %v196 = vmax.f32 %v195, 0.0
    %v197 = vperm.slane %v54, 0
    %vm198 = vcmask 64512
    %v200 = vsel %vm198, %v196, 0
    %202 = vmatpush.msra.mxu0 0.0
    %203 = vmatpush.msra.mxu0 0.0
    %204 = vmatpush.msra.mxu0 0.0
    %205 = vmatpush.msra.mxu0 0.0
    %206 = vmatpush.msra.mxu0 0.0
    %207 = vmatpush.msra.mxu0 0.0
    %208 = vmatpush.msra.mxu0 0.0
    %209 = vmatpush.msra.mxu0 0.0
    %210 = vmatpush.msra.mxu0 0.0
    %211 = vmatpush.msra.mxu0 0.0
    %212 = vmatpush.msra.mxu0 0.0
    %213 = vmatpush.msra.mxu0 0.0
    %214 = vmatpush.msra.mxu0 0.0
    %215 = vmatpush.msra.mxu0 0.0
    %216 = vmatpush.msra.mxu0 0.0
    %217 = vmatpush.msra.mxu0 %v53
    %218 = vmatmul.f32.gmra.mxu0 %v200
    %v219 = vpop.f32.mrf.mxu0
    %v220 = vadd.f32 %v197, %v219
    %221 = vdwg.mxu0
    %222 = vst.msk [vmem:[#allocation2] sm:$0x3] %vm162, %v220
    // Predicated region
    $region10: #{tpu_custom_call.1} parent=1 // pred_check
      _
    $region11: #{tpu_custom_call.1} parent=1 // pred_check_branch
      %224 = sbr.rel (0) target = $region13
    $region12: #{tpu_custom_call.1} parent=1 // pred_region
      %226 = vsyncadd [#allocation3], 0
      %s228 = sshll.u32 [#allocation2], 4
      %s229 = int_to_ptr.vmem [resolvable:$true] %s228
      %s230 = sshll.u32 %s2, 4
      %s231 = int_to_ptr.hbm [resolvable:$true] %s230
      %233 = dma.vmem_to_hbm [thread:$0]  %s229, 32, %s231, [#allocation3]
    $region13: #{tpu_custom_call.1} parent=1 // pred_fallthru
      _
    // Predicated region
    $region14: #{tpu_custom_call.1} parent=1 // pred_check
      _
    $region15: #{tpu_custom_call.1} parent=1 // pred_check_branch
      %235 = sbr.rel (0) target = $region17
    $region16: #{tpu_custom_call.1} parent=1 // pred_region
      %237 = dma.done [#allocation3], 32
    $region17: #{tpu_custom_call.1} parent=1 // pred_fallthru
      _
    %238 = vsyncpa [#allocation3], 1

</llo_original>
